<compile_context>
chip_gen: v5e
topology: v5e:2x2
jax: 0.10.0
libtpu: 0.0.40
codegen_flags: <defaults>
</compile_context>

<pallas_src>
import jax
import jax.numpy as jnp
from jax.experimental import pallas as pl
from jax.experimental.pallas import tpu as pltpu


def _make_gmof_kernel(rho2: float):
    """Elementwise GMoF body; rho^2 baked in as a trace-time constant."""

    def kernel(x_ref, o_ref):
        x = x_ref[...].astype(jnp.float32)      # upcast only in-register
        sq = x * x
        o_ref[...] = ((rho2 * sq) / (sq + rho2)).astype(o_ref.dtype)

    return kernel


def gmof(residual: jax.Array, rho: float = 1.0) -> jax.Array:
    orig_shape = residual.shape
    dtype = residual.dtype
    n = int(residual.size)
    if n == 0:
        return residual

    kernel = _make_gmof_kernel(float(rho) ** 2)
    itemsize = jnp.dtype(dtype).itemsize
    # native sublane tile multiple: 8 (32-bit), 16 (16-bit), 32 (8-bit)
    sub = max(8, 32 // max(itemsize, 1))

    # Widest lane-dense last dim that divides n exactly (unmasked vst, no pad).
    lane = None
    for cand in (1024, 512, 256, 128):
        if n % cand == 0:
            lane = cand
            break

    # ~2 MiB tiles: double-buffered in+out (~4x tile ~= 8 MiB) stays under the
    # default scoped-VMEM limit on every chip (v5e 16 MiB, v6e/v7x 32 MiB).
    TARGET_TILE_BYTES = 2 * 1024 * 1024
    SMALL_SINGLE_BLOCK_BYTES = 2 * 1024 * 1024

    flat = residual.reshape(-1)

    if lane is None:
        if n * itemsize <= SMALL_SINGLE_BLOCK_BYTES:
            # Ragged but small: whole flat tensor as one (1, n) full-extent
            # block (always layout-legal) -> no padding pass, no slicing pass.
            lane = n
            n_pad = n
        else:
            # Ragged and large: pad by at most 127 elements to a 128 multiple.
            lane = 128
            n_pad = pl.cdiv(n, lane) * lane
            flat = jnp.pad(flat, (0, n_pad - n))
    else:
        n_pad = n

    rows = n_pad // lane
    x2d = flat.reshape(rows, lane)

    max_rows = max(sub, (TARGET_TILE_BYTES // (lane * itemsize)) // sub * sub)
    if rows <= max_rows:
        block_rows = rows            # full-extent block: always a legal shape
        grid = (1,)
    else:
        block_rows = max_rows        # multiple of the sublane tile
        grid = (pl.cdiv(rows, block_rows),)   # ragged last block is masked

    out2d = pl.pallas_call(
        kernel,
        out_shape=jax.ShapeDtypeStruct((rows, lane), dtype),
        grid_spec=pltpu.PrefetchScalarGridSpec(
            num_scalar_prefetch=0,
            grid=grid,
            in_specs=[pl.BlockSpec((block_rows, lane), lambda i: (i, 0))],
            out_specs=pl.BlockSpec((block_rows, lane), lambda i: (i, 0)),
        ),
        compiler_params=pltpu.CompilerParams(
            dimension_semantics=("parallel",),
        ),
    )(x2d)

    out_flat = out2d.reshape(-1)
    if n_pad != n:
        out_flat = out_flat[:n]
    return out_flat.reshape(orig_shape)


def _gmof_ref(x, rho):
    xf = x.astype(jnp.float32)
    sq = xf * xf
    return ((rho ** 2) * sq / (sq + rho ** 2)).astype(x.dtype)


if __name__ == "__main__":
    key = jax.random.PRNGKey(0)
    rho = 1.0

    # Main case: NCHW-style residual tensor (lane-aligned total size).
    x = jax.random.normal(key, (2, 4, 16, 16), dtype=jnp.float32)
    y = gmof(x, rho)
    jax.block_until_ready(y)
    assert y.shape == x.shape and y.dtype == x.dtype
    assert jnp.allclose(y, _gmof_ref(x, rho), atol=1e-5, rtol=1e-5)

    # Ragged total size (exercises the no-pad single-block path).
    k2, k3 = jax.random.split(jax.random.PRNGKey(0))
    xr = jax.random.normal(k2, (3, 5, 7), dtype=jnp.float32)
    yr = gmof(xr, rho=0.5)
    jax.block_until_ready(yr)
    assert yr.shape == xr.shape and yr.dtype == xr.dtype
    assert jnp.allclose(yr, _gmof_ref(xr, 0.5), atol=1e-5, rtol=1e-5)

    # bf16 input (kernel upcasts internally, output stays bf16).
    xb = jax.random.normal(k3, (2, 4, 16, 16), dtype=jnp.bfloat16)
    yb = gmof(xb, rho)
    jax.block_until_ready(yb)
    assert yb.shape == xb.shape and yb.dtype == xb.dtype
    assert jnp.allclose(yb.astype(jnp.float32),
                        _gmof_ref(xb, rho).astype(jnp.float32),
                        atol=1e-2, rtol=1e-2)

    print("KERNEL_OK")
</pallas_src>

<mosaic_0001>
module attributes {stable_mosaic.version = 11 : i64} {
  func.func @kernel(%arg0: i32, %arg1: memref<2x1024xf32, #tpu.memory_space<vmem>>, %arg2: memref<2x1024xf32, #tpu.memory_space<vmem>>) attributes {dimension_semantics = [#tpu.dimension_semantics<parallel>], iteration_bounds = array<i64: 1>, scalar_prefetch = 0 : i64, scratch_operands = 0 : i64, tpu.core_type = #tpu.core_type<tc>, window_params = [{transform_indices = @transform_0, window_bounds = array<i64: 2, 1024>}, {transform_indices = @transform_1, window_bounds = array<i64: 2, 1024>}]} {
    %c0 = arith.constant 0 : index
    %c0_0 = arith.constant 0 : index
    %0 = vector.load %arg1[%c0, %c0_0] : memref<2x1024xf32, #tpu.memory_space<vmem>>, vector<2x1024xf32>
    %1 = arith.mulf %0, %0 : vector<2x1024xf32>
    %cst = arith.constant 1.000000e+00 : f32
    %2 = vector.broadcast %cst : f32 to vector<2x1024xf32>
    %3 = arith.mulf %2, %1 : vector<2x1024xf32>
    %cst_1 = arith.constant 1.000000e+00 : f32
    %4 = vector.broadcast %cst_1 : f32 to vector<2x1024xf32>
    %5 = arith.addf %1, %4 : vector<2x1024xf32>
    %6 = arith.divf %3, %5 : vector<2x1024xf32>
    %c0_2 = arith.constant 0 : index
    %c0_3 = arith.constant 0 : index
    %7 = vector.load %arg2[%c0_2, %c0_3] : memref<2x1024xf32, #tpu.memory_space<vmem>>, vector<2x1024xf32>
    tpu.vector_store %arg2[%c0_2, %c0_3], %6 {strides = array<i32>} : memref<2x1024xf32, #tpu.memory_space<vmem>>, vector<2x1024xf32>,
    return
  }
  func.func @transform_0(%arg0: i32) -> (i32, i32) {
    %c0_i32 = arith.constant 0 : i32
    %c0_i32_0 = arith.constant 0 : i32
    return %arg0, %c0_i32 : i32, i32
  }
  func.func @transform_1(%arg0: i32) -> (i32, i32) {
    %c0_i32 = arith.constant 0 : i32
    %c0_i32_0 = arith.constant 0 : i32
    return %arg0, %c0_i32 : i32, i32
  }
}

</mosaic_0001>

<llo_original>
// kernel: tpu_custom_call.1
$region0: #{tpu_custom_call.1}
  #allocation0 [shape = 'u32[]', space=smem, size = 0x4, offset = 0x4, fixed_abs, tag = 'smem constant byte address 0x4 - core index']
  #allocation1 [shape = 'u32[72,128]{1,0:T(1,128)}', space=vmem, size = 0x9000, scoped, tag = 'internal scratch']
  %s0 = inlined_call_operand.hbm [shape: f32[2,1024], index: 0, kind: input, shape index: {}]
  %s1 = inlined_call_operand.hbm [shape: f32[2,1024], index: 1, kind: output, shape index: {}]
  %s2 = sld [smem:[#allocation0]]
  $region18: #{tpu_custom_call.1} parent=0
    _
  %s4 = ssub.s32 1, %s2
  %s5 = scalar_select 0, %s4, %s2
  $region1: #{tpu_custom_call.1} parent=0
    #allocation2 [shape = 'u8[8192]{0}', space=vmem, size = 0x2000, scoped, tag = 'input window, operand 0, single buffered']
    #allocation3 [shape = 's32[1]{0}', space=sflag, size = 0x4, scoped, tag = 'scoped memory for tpu_custom_call.1']
    #allocation4 [shape = 's32[1]{0}', space=sflag, size = 0x4, scoped, tag = 'scoped memory for tpu_custom_call.1']
    #allocation5 [shape = 'u8[8192]{0}', space=vmem, size = 0x2000, scoped, tag = 'output window, operand 0, single buffered']
    %6 = vsyncpa [#allocation3], 0
    %7 = vsyncpa [#allocation4], 0
    // Predicated region
    $region2: #{tpu_custom_call.1} parent=1 // pred_check
      _
    $region3: #{tpu_custom_call.1} parent=1 // pred_check_branch
      %9 = sbr.rel (0) target = $region5
    $region4: #{tpu_custom_call.1} parent=1 // pred_region
      %11 = vsyncadd [#allocation3], 0
      %s13 = sshll.u32 %s0, 4
      %s14 = int_to_ptr.hbm [resolvable:$true] %s13
      %s15 = sshll.u32 [#allocation2], 4
      %s16 = int_to_ptr.vmem [resolvable:$true] %s15
      %18 = dma.hbm_to_vmem [thread:$0]  %s14, 256, %s16, [#allocation3]
    $region5: #{tpu_custom_call.1} parent=1 // pred_fallthru
      _
    // Predicated region
    $region6: #{tpu_custom_call.1} parent=1 // pred_check
      _
    $region7: #{tpu_custom_call.1} parent=1 // pred_check_branch
      %20 = sbr.rel (0) target = $region9
    $region8: #{tpu_custom_call.1} parent=1 // pred_region
      %22 = dma.done [#allocation3], 256
    $region9: #{tpu_custom_call.1} parent=1 // pred_fallthru
      _
    %v23 = vld [vmem:[#allocation2] sm:$0xff]
    %v24 = vld [vmem:[#allocation2 + $0x8] sm:$0xff]
    %v25 = vmul.f32 %v23, %v23
    %v26 = vmul.f32 %v24, %v24
    %v27 = vadd.f32 %v25, 1.0
    %v28 = vadd.f32 %v26, 1.0
    %v29 = vrcp.pop %v27
    %v30 = vmul.f32 %v27, %v29
    %v31 = vsub.f32 1.0, %v30
    %v32 = vmul.f32 %v29, %v31
    %v33 = vadd.f32 %v29, %v32
    %vm34 = vweird.f32 %v27
    %vm35 = vweird.f32 %v29
    %vm36 = vmor %vm34, %vm35
    %v37 = vsel %vm36, %v29, %v33
    %v38 = vand.u32 2147483647, %v27
    %vm39 = vcmp.eq.f32.partialorder %v38, 8.507059e+37
    %v40 = vand.u32 %v27, 2147483648
    %v41 = vor.u32 1.1754944e-38, %v40
    %v42 = vsel %vm39, %v41, %v37
    %v43 = vmul.f32 %v25, %v42
    %v44 = vrcp.pop %v28
    %v45 = vmul.f32 %v28, %v44
    %v46 = vsub.f32 1.0, %v45
    %v47 = vmul.f32 %v44, %v46
    %v48 = vadd.f32 %v44, %v47
    %vm49 = vweird.f32 %v28
    %vm50 = vweird.f32 %v44
    %vm51 = vmor %vm49, %vm50
    %v52 = vsel %vm51, %v44, %v48
    %v53 = vand.u32 2147483647, %v28
    %vm54 = vcmp.eq.f32.partialorder %v53, 8.507059e+37
    %v55 = vand.u32 %v28, 2147483648
    %v56 = vor.u32 1.1754944e-38, %v55
    %v57 = vsel %vm54, %v56, %v52
    %v58 = vmul.f32 %v26, %v57
    %59 = vst [vmem:[#allocation5] sm:$0xff] %v43
    %60 = vst [vmem:[#allocation5 + $0x8] sm:$0xff] %v58
    // Predicated region
    $region10: #{tpu_custom_call.1} parent=1 // pred_check
      _
    $region11: #{tpu_custom_call.1} parent=1 // pred_check_branch
      %62 = sbr.rel (0) target = $region13
    $region12: #{tpu_custom_call.1} parent=1 // pred_region
      %64 = vsyncadd [#allocation4], 0
      %s66 = sshll.u32 [#allocation5], 4
      %s67 = int_to_ptr.vmem [resolvable:$true] %s66
      %s68 = sshll.u32 %s1, 4
      %s69 = int_to_ptr.hbm [resolvable:$true] %s68
      %71 = dma.vmem_to_hbm [thread:$0]  %s67, 256, %s69, [#allocation4]
    $region13: #{tpu_custom_call.1} parent=1 // pred_fallthru
      _
    // Predicated region
    $region14: #{tpu_custom_call.1} parent=1 // pred_check
      _
    $region15: #{tpu_custom_call.1} parent=1 // pred_check_branch
      %73 = sbr.rel (0) target = $region17
    $region16: #{tpu_custom_call.1} parent=1 // pred_region
      %75 = dma.done [#allocation4], 256
    $region17: #{tpu_custom_call.1} parent=1 // pred_fallthru
      _
    %76 = vsyncpa [#allocation3], 1
    %77 = vsyncpa [#allocation4], 1

</llo_original>
